<compile_context>
chip_gen: v5e
topology: v5e:2x2
jax: 0.10.0
libtpu: 0.0.40
codegen_flags: <defaults>
</compile_context>

<pallas_src>
import jax
import jax.numpy as jnp
from jax.experimental import pallas as pl
from jax.experimental.pallas import tpu as pltpu


def _make_rnn_kernel(L, T, B, D_in, H):
    def kernel(x_ref, h0_ref, *rest):
        # rest layout: [3*L weight refs (wih_t, whh_t, bias)] + [w_out, b_out] + [out, hN]
        w_refs = rest[: 3 * L + 2]
        out_ref, hN_ref = rest[3 * L + 2], rest[3 * L + 3]

        # Load the (tiny) weights once; they stay vreg/VMEM resident for the whole kernel.
        wih = [w_refs[3 * l][...] for l in range(L)]        # (D_l, H)  pre-transposed
        whh = [w_refs[3 * l + 1][...] for l in range(L)]    # (H, H)    pre-transposed
        bias = [w_refs[3 * l + 2][...] for l in range(L)]   # (1, H)    = b_ih + b_hh
        wout = w_refs[3 * L][...]                           # (H, D_in) pre-transposed
        bout = w_refs[3 * L + 1][...]                       # (1, D_in)

        h_cur = [h0_ref[l] for l in range(L)]                # (B, H) per layer
        h_seq = [[None] * T for _ in range(L)]               # register-resident step outputs

        # Wavefront schedule: at wavefront w, layer l processes timestep t = w - l.
        # Layer l consumes layer l-1's output for the same t, produced one wavefront earlier,
        # directly as a traced value (no scratch, no readback).
        for wv in range(T + L - 1):
            for l in range(L):
                t = wv - l
                if not (0 <= t < T):
                    continue
                if l == 0:
                    inp = x_ref[:, t * D_in:(t + 1) * D_in]   # (B, D_in) static slice load
                else:
                    inp = h_seq[l - 1][t]                     # (B, H) from previous wavefront
                ih = jnp.dot(inp, wih[l], preferred_element_type=jnp.float32)
                hh = jnp.dot(h_cur[l], whh[l], preferred_element_type=jnp.float32)
                hnew = jnp.tanh(ih + hh + bias[l])
                h_cur[l] = hnew
                h_seq[l][t] = hnew
                if l == L - 1:
                    # Output projection for this step: off the recurrence chain, terminal store.
                    y = jnp.dot(hnew, wout, preferred_element_type=jnp.float32) + bout
                    # Columns t*D_in:(t+1)*D_in of row b  <=>  row b*T + t of the (B*T, D_in) view.
                    out_ref[:, t * D_in:(t + 1) * D_in] = y

        # Final hidden state of every layer, written once as a single slab.
        hN_ref[...] = jnp.stack(h_cur, axis=0)               # (L, B, H)

    return kernel


@jax.jit
def my_rnn_forward(x_btd, h0, params):
    """x_btd: (B, T, D_in) float32 (batch_first, like PyTorch). h0: (L, B, H).
    Returns (output, hidden) matching the PyTorch forward:
      output: (B*T, D_in) with rows ordered b*T + t, hidden: (L, B, H)."""
    B, T, D_in = x_btd.shape
    L, _, H = h0.shape

    # Free contiguous view; the kernel indexes columns t*D_in:(t+1)*D_in per timestep.
    x2 = x_btd.reshape(B, T * D_in)

    weight_args = []
    for l in range(L):
        weight_args += list(params["layers"][l])   # wih_t, whh_t, folded bias
    weight_args += list(params["out"])             # wout_t, bout

    vmem = pl.BlockSpec(memory_space=pltpu.MemorySpace.VMEM)
    n_in = 2 + len(weight_args)

    out2, hN = pl.pallas_call(
        _make_rnn_kernel(L, T, B, D_in, H),
        out_shape=(
            jax.ShapeDtypeStruct((B, T * D_in), jnp.float32),
            jax.ShapeDtypeStruct((L, B, H), jnp.float32),
        ),
        in_specs=[vmem] * n_in,
        out_specs=(vmem, vmem),
    )(x2, h0, *weight_args)

    # (B, T*D_in) -> (B*T, D_in) is a free contiguous view; rows ordered b*T + t,
    # exactly PyTorch's r_out.view(-1, H) ordering after the Linear.
    return out2.reshape(B * T, D_in), hN


def init_params(key, input_size, hidden_size, num_layers):
    """Deterministic init mimicking nn.RNN / nn.Linear uniform(-1/sqrt(H), 1/sqrt(H)).
    Weights stored pre-transposed; the two RNN biases are pre-summed into one."""
    H = hidden_size
    bound = 1.0 / jnp.sqrt(jnp.float32(H))
    layers = []
    for l in range(num_layers):
        d_l = input_size if l == 0 else H
        key, k1, k2, k3, k4 = jax.random.split(key, 5)
        wih_t = jax.random.uniform(k1, (d_l, H), jnp.float32, -bound, bound)
        whh_t = jax.random.uniform(k2, (H, H), jnp.float32, -bound, bound)
        bih = jax.random.uniform(k3, (1, H), jnp.float32, -bound, bound)
        bhh = jax.random.uniform(k4, (1, H), jnp.float32, -bound, bound)
        layers.append((wih_t, whh_t, bih + bhh))  # folded bias
    key, k5, k6 = jax.random.split(key, 3)
    wout_t = jax.random.uniform(k5, (H, input_size), jnp.float32, -bound, bound)
    bout = jax.random.uniform(k6, (1, input_size), jnp.float32, -bound, bound)
    return {"layers": layers, "out": (wout_t, bout)}


def reference_forward(x_btd, h0, params):
    """Pure-JAX reference of the PyTorch forward (for correctness check)."""
    B, T, D_in = x_btd.shape
    L, _, H = h0.shape
    h = [h0[l] for l in range(L)]
    outs = []
    for t in range(T):
        inp = x_btd[:, t, :]
        for l in range(L):
            wih_t, whh_t, bias = params["layers"][l]
            h[l] = jnp.tanh(inp @ wih_t + h[l] @ whh_t + bias)
            inp = h[l]
        outs.append(inp)
    r_out = jnp.stack(outs, axis=1)  # (B, T, H)
    wout_t, bout = params["out"]
    output = r_out.reshape(-1, H) @ wout_t + bout
    return output, jnp.stack(h, axis=0)


if __name__ == "__main__":
    # Small shapes implied by the module: batch=2, seq=8, input_size=8, hidden_size=32, layers=2
    B, T, D_in, H, L = 2, 8, 8, 32, 2

    key = jax.random.PRNGKey(0)
    kx, kh, kp = jax.random.split(key, 3)
    x = jax.random.normal(kx, (B, T, D_in), jnp.float32)
    h0 = jax.random.normal(kh, (L, B, H), jnp.float32)
    params = init_params(kp, D_in, H, L)

    output, hidden = my_rnn_forward(x, h0, params)
    output, hidden = jax.block_until_ready((output, hidden))

    ref_out, ref_hid = reference_forward(x, h0, params)
    assert output.shape == (B * T, D_in)
    assert hidden.shape == (L, B, H)
    assert jnp.allclose(output, ref_out, atol=1e-5, rtol=1e-5)
    assert jnp.allclose(hidden, ref_hid, atol=1e-5, rtol=1e-5)

    print("KERNEL_OK")
</pallas_src>

<mosaic_0001>
module attributes {stable_mosaic.version = 11 : i64} {
  func.func @kernel(%arg0: memref<2x64xf32, #tpu.memory_space<vmem>>, %arg1: memref<2x2x32xf32, #tpu.memory_space<vmem>>, %arg2: memref<8x32xf32, #tpu.memory_space<vmem>>, %arg3: memref<32x32xf32, #tpu.memory_space<vmem>>, %arg4: memref<1x32xf32, #tpu.memory_space<vmem>>, %arg5: memref<32x32xf32, #tpu.memory_space<vmem>>, %arg6: memref<32x32xf32, #tpu.memory_space<vmem>>, %arg7: memref<1x32xf32, #tpu.memory_space<vmem>>, %arg8: memref<32x8xf32, #tpu.memory_space<vmem>>, %arg9: memref<1x8xf32, #tpu.memory_space<vmem>>, %arg10: memref<2x64xf32, #tpu.memory_space<vmem>>, %arg11: memref<2x2x32xf32, #tpu.memory_space<vmem>>) attributes {dimension_semantics = [], scalar_prefetch = 0 : i64, scratch_operands = 0 : i64, tpu.core_type = #tpu.core_type<tc>} {
    %c0 = arith.constant 0 : index
    %c0_0 = arith.constant 0 : index
    %0 = vector.load %arg2[%c0, %c0_0] : memref<8x32xf32, #tpu.memory_space<vmem>>, vector<8x32xf32>
    %c0_1 = arith.constant 0 : index
    %c0_2 = arith.constant 0 : index
    %1 = vector.load %arg5[%c0_1, %c0_2] : memref<32x32xf32, #tpu.memory_space<vmem>>, vector<32x32xf32>
    %c0_3 = arith.constant 0 : index
    %c0_4 = arith.constant 0 : index
    %2 = vector.load %arg3[%c0_3, %c0_4] : memref<32x32xf32, #tpu.memory_space<vmem>>, vector<32x32xf32>
    %c0_5 = arith.constant 0 : index
    %c0_6 = arith.constant 0 : index
    %3 = vector.load %arg6[%c0_5, %c0_6] : memref<32x32xf32, #tpu.memory_space<vmem>>, vector<32x32xf32>
    %c0_7 = arith.constant 0 : index
    %c0_8 = arith.constant 0 : index
    %4 = vector.load %arg4[%c0_7, %c0_8] : memref<1x32xf32, #tpu.memory_space<vmem>>, vector<1x32xf32>
    %c0_9 = arith.constant 0 : index
    %c0_10 = arith.constant 0 : index
    %5 = vector.load %arg7[%c0_9, %c0_10] : memref<1x32xf32, #tpu.memory_space<vmem>>, vector<1x32xf32>
    %c0_11 = arith.constant 0 : index
    %c0_12 = arith.constant 0 : index
    %6 = vector.load %arg8[%c0_11, %c0_12] : memref<32x8xf32, #tpu.memory_space<vmem>>, vector<32x8xf32>
    %c0_13 = arith.constant 0 : index
    %c0_14 = arith.constant 0 : index
    %7 = vector.load %arg9[%c0_13, %c0_14] : memref<1x8xf32, #tpu.memory_space<vmem>>, vector<1x8xf32>
    %c0_15 = arith.constant 0 : index
    %c0_16 = arith.constant 0 : index
    %c0_17 = arith.constant 0 : index
    %8 = vector.load %arg1[%c0_15, %c0_16, %c0_17] : memref<2x2x32xf32, #tpu.memory_space<vmem>>, vector<1x2x32xf32>
    %9 = vector.shape_cast %8 : vector<1x2x32xf32> to vector<2x32xf32>
    %c1 = arith.constant 1 : index
    %c0_18 = arith.constant 0 : index
    %c0_19 = arith.constant 0 : index
    %10 = vector.load %arg1[%c1, %c0_18, %c0_19] : memref<2x2x32xf32, #tpu.memory_space<vmem>>, vector<1x2x32xf32>
    %11 = vector.shape_cast %10 : vector<1x2x32xf32> to vector<2x32xf32>
    %c0_20 = arith.constant 0 : index
    %c0_21 = arith.constant 0 : index
    %12 = vector.load %arg0[%c0_20, %c0_21] : memref<2x64xf32, #tpu.memory_space<vmem>>, vector<2x8xf32>
    %cst = arith.constant dense<0.000000e+00> : vector<2x32xf32>
    %13 = tpu.matmul %12, %0, %cst {dimension_numbers = #tpu.dot_dimension_numbers<[1], [0], [0], [1], [0, 0, 1, 1], [], []>} : vector<2x8xf32>, vector<8x32xf32>, vector<2x32xf32> -> vector<2x32xf32>
    %cst_22 = arith.constant dense<0.000000e+00> : vector<2x32xf32>
    %14 = tpu.matmul %9, %2, %cst_22 {dimension_numbers = #tpu.dot_dimension_numbers<[1], [0], [0], [1], [0, 0, 1, 1], [], []>} : vector<2x32xf32>, vector<32x32xf32>, vector<2x32xf32> -> vector<2x32xf32>
    %15 = arith.addf %13, %14 : vector<2x32xf32>
    %16 = vector.broadcast %4 : vector<1x32xf32> to vector<2x32xf32>
    %17 = arith.addf %15, %16 : vector<2x32xf32>
    %18 = math.tanh %17 : vector<2x32xf32>
    %c0_23 = arith.constant 0 : index
    %c8 = arith.constant 8 : index
    %19 = vector.load %arg0[%c0_23, %c8] : memref<2x64xf32, #tpu.memory_space<vmem>>, vector<2x8xf32>
    %cst_24 = arith.constant dense<0.000000e+00> : vector<2x32xf32>
    %20 = tpu.matmul %19, %0, %cst_24 {dimension_numbers = #tpu.dot_dimension_numbers<[1], [0], [0], [1], [0, 0, 1, 1], [], []>} : vector<2x8xf32>, vector<8x32xf32>, vector<2x32xf32> -> vector<2x32xf32>
    %cst_25 = arith.constant dense<0.000000e+00> : vector<2x32xf32>
    %21 = tpu.matmul %18, %2, %cst_25 {dimension_numbers = #tpu.dot_dimension_numbers<[1], [0], [0], [1], [0, 0, 1, 1], [], []>} : vector<2x32xf32>, vector<32x32xf32>, vector<2x32xf32> -> vector<2x32xf32>
    %22 = arith.addf %20, %21 : vector<2x32xf32>
    %23 = vector.broadcast %4 : vector<1x32xf32> to vector<2x32xf32>
    %24 = arith.addf %22, %23 : vector<2x32xf32>
    %25 = math.tanh %24 : vector<2x32xf32>
    %cst_26 = arith.constant dense<0.000000e+00> : vector<2x32xf32>
    %26 = tpu.matmul %18, %1, %cst_26 {dimension_numbers = #tpu.dot_dimension_numbers<[1], [0], [0], [1], [0, 0, 1, 1], [], []>} : vector<2x32xf32>, vector<32x32xf32>, vector<2x32xf32> -> vector<2x32xf32>
    %cst_27 = arith.constant dense<0.000000e+00> : vector<2x32xf32>
    %27 = tpu.matmul %11, %3, %cst_27 {dimension_numbers = #tpu.dot_dimension_numbers<[1], [0], [0], [1], [0, 0, 1, 1], [], []>} : vector<2x32xf32>, vector<32x32xf32>, vector<2x32xf32> -> vector<2x32xf32>
    %28 = arith.addf %26, %27 : vector<2x32xf32>
    %29 = vector.broadcast %5 : vector<1x32xf32> to vector<2x32xf32>
    %30 = arith.addf %28, %29 : vector<2x32xf32>
    %31 = math.tanh %30 : vector<2x32xf32>
    %cst_28 = arith.constant dense<0.000000e+00> : vector<2x8xf32>
    %32 = tpu.matmul %31, %6, %cst_28 {dimension_numbers = #tpu.dot_dimension_numbers<[1], [0], [0], [1], [0, 0, 1, 1], [], []>} : vector<2x32xf32>, vector<32x8xf32>, vector<2x8xf32> -> vector<2x8xf32>
    %33 = vector.broadcast %7 : vector<1x8xf32> to vector<2x8xf32>
    %34 = arith.addf %32, %33 : vector<2x8xf32>
    %c0_29 = arith.constant 0 : index
    %c0_30 = arith.constant 0 : index
    %35 = vector.load %arg10[%c0_29, %c0_30] : memref<2x64xf32, #tpu.memory_space<vmem>>, vector<2x8xf32>
    tpu.vector_store %arg10[%c0_29, %c0_30], %34 {strides = array<i32>} : memref<2x64xf32, #tpu.memory_space<vmem>>, vector<2x8xf32>,
    %c0_31 = arith.constant 0 : index
    %c16 = arith.constant 16 : index
    %36 = vector.load %arg0[%c0_31, %c16] : memref<2x64xf32, #tpu.memory_space<vmem>>, vector<2x8xf32>
    %cst_32 = arith.constant dense<0.000000e+00> : vector<2x32xf32>
    %37 = tpu.matmul %36, %0, %cst_32 {dimension_numbers = #tpu.dot_dimension_numbers<[1], [0], [0], [1], [0, 0, 1, 1], [], []>} : vector<2x8xf32>, vector<8x32xf32>, vector<2x32xf32> -> vector<2x32xf32>
    %cst_33 = arith.constant dense<0.000000e+00> : vector<2x32xf32>
    %38 = tpu.matmul %25, %2, %cst_33 {dimension_numbers = #tpu.dot_dimension_numbers<[1], [0], [0], [1], [0, 0, 1, 1], [], []>} : vector<2x32xf32>, vector<32x32xf32>, vector<2x32xf32> -> vector<2x32xf32>
    %39 = arith.addf %37, %38 : vector<2x32xf32>
    %40 = vector.broadcast %4 : vector<1x32xf32> to vector<2x32xf32>
    %41 = arith.addf %39, %40 : vector<2x32xf32>
    %42 = math.tanh %41 : vector<2x32xf32>
    %cst_34 = arith.constant dense<0.000000e+00> : vector<2x32xf32>
    %43 = tpu.matmul %25, %1, %cst_34 {dimension_numbers = #tpu.dot_dimension_numbers<[1], [0], [0], [1], [0, 0, 1, 1], [], []>} : vector<2x32xf32>, vector<32x32xf32>, vector<2x32xf32> -> vector<2x32xf32>
    %cst_35 = arith.constant dense<0.000000e+00> : vector<2x32xf32>
    %44 = tpu.matmul %31, %3, %cst_35 {dimension_numbers = #tpu.dot_dimension_numbers<[1], [0], [0], [1], [0, 0, 1, 1], [], []>} : vector<2x32xf32>, vector<32x32xf32>, vector<2x32xf32> -> vector<2x32xf32>
    %45 = arith.addf %43, %44 : vector<2x32xf32>
    %46 = vector.broadcast %5 : vector<1x32xf32> to vector<2x32xf32>
    %47 = arith.addf %45, %46 : vector<2x32xf32>
    %48 = math.tanh %47 : vector<2x32xf32>
    %cst_36 = arith.constant dense<0.000000e+00> : vector<2x8xf32>
    %49 = tpu.matmul %48, %6, %cst_36 {dimension_numbers = #tpu.dot_dimension_numbers<[1], [0], [0], [1], [0, 0, 1, 1], [], []>} : vector<2x32xf32>, vector<32x8xf32>, vector<2x8xf32> -> vector<2x8xf32>
    %50 = vector.broadcast %7 : vector<1x8xf32> to vector<2x8xf32>
    %51 = arith.addf %49, %50 : vector<2x8xf32>
    %c0_37 = arith.constant 0 : index
    %c8_38 = arith.constant 8 : index
    %52 = vector.load %arg10[%c0_37, %c8_38] : memref<2x64xf32, #tpu.memory_space<vmem>>, vector<2x8xf32>
    tpu.vector_store %arg10[%c0_37, %c8_38], %51 {strides = array<i32>} : memref<2x64xf32, #tpu.memory_space<vmem>>, vector<2x8xf32>,
    %c0_39 = arith.constant 0 : index
    %c24 = arith.constant 24 : index
    %53 = vector.load %arg0[%c0_39, %c24] : memref<2x64xf32, #tpu.memory_space<vmem>>, vector<2x8xf32>
    %cst_40 = arith.constant dense<0.000000e+00> : vector<2x32xf32>
    %54 = tpu.matmul %53, %0, %cst_40 {dimension_numbers = #tpu.dot_dimension_numbers<[1], [0], [0], [1], [0, 0, 1, 1], [], []>} : vector<2x8xf32>, vector<8x32xf32>, vector<2x32xf32> -> vector<2x32xf32>
    %cst_41 = arith.constant dense<0.000000e+00> : vector<2x32xf32>
    %55 = tpu.matmul %42, %2, %cst_41 {dimension_numbers = #tpu.dot_dimension_numbers<[1], [0], [0], [1], [0, 0, 1, 1], [], []>} : vector<2x32xf32>, vector<32x32xf32>, vector<2x32xf32> -> vector<2x32xf32>
    %56 = arith.addf %54, %55 : vector<2x32xf32>
    %57 = vector.broadcast %4 : vector<1x32xf32> to vector<2x32xf32>
    %58 = arith.addf %56, %57 : vector<2x32xf32>
    %59 = math.tanh %58 : vector<2x32xf32>
    %cst_42 = arith.constant dense<0.000000e+00> : vector<2x32xf32>
    %60 = tpu.matmul %42, %1, %cst_42 {dimension_numbers = #tpu.dot_dimension_numbers<[1], [0], [0], [1], [0, 0, 1, 1], [], []>} : vector<2x32xf32>, vector<32x32xf32>, vector<2x32xf32> -> vector<2x32xf32>
    %cst_43 = arith.constant dense<0.000000e+00> : vector<2x32xf32>
    %61 = tpu.matmul %48, %3, %cst_43 {dimension_numbers = #tpu.dot_dimension_numbers<[1], [0], [0], [1], [0, 0, 1, 1], [], []>} : vector<2x32xf32>, vector<32x32xf32>, vector<2x32xf32> -> vector<2x32xf32>
    %62 = arith.addf %60, %61 : vector<2x32xf32>
    %63 = vector.broadcast %5 : vector<1x32xf32> to vector<2x32xf32>
    %64 = arith.addf %62, %63 : vector<2x32xf32>
    %65 = math.tanh %64 : vector<2x32xf32>
    %cst_44 = arith.constant dense<0.000000e+00> : vector<2x8xf32>
    %66 = tpu.matmul %65, %6, %cst_44 {dimension_numbers = #tpu.dot_dimension_numbers<[1], [0], [0], [1], [0, 0, 1, 1], [], []>} : vector<2x32xf32>, vector<32x8xf32>, vector<2x8xf32> -> vector<2x8xf32>
    %67 = vector.broadcast %7 : vector<1x8xf32> to vector<2x8xf32>
    %68 = arith.addf %66, %67 : vector<2x8xf32>
    %c0_45 = arith.constant 0 : index
    %c16_46 = arith.constant 16 : index
    %69 = vector.load %arg10[%c0_45, %c16_46] : memref<2x64xf32, #tpu.memory_space<vmem>>, vector<2x8xf32>
    tpu.vector_store %arg10[%c0_45, %c16_46], %68 {strides = array<i32>} : memref<2x64xf32, #tpu.memory_space<vmem>>, vector<2x8xf32>,
    %c0_47 = arith.constant 0 : index
    %c32 = arith.constant 32 : index
    %70 = vector.load %arg0[%c0_47, %c32] : memref<2x64xf32, #tpu.memory_space<vmem>>, vector<2x8xf32>
    %cst_48 = arith.constant dense<0.000000e+00> : vector<2x32xf32>
    %71 = tpu.matmul %70, %0, %cst_48 {dimension_numbers = #tpu.dot_dimension_numbers<[1], [0], [0], [1], [0, 0, 1, 1], [], []>} : vector<2x8xf32>, vector<8x32xf32>, vector<2x32xf32> -> vector<2x32xf32>
    %cst_49 = arith.constant dense<0.000000e+00> : vector<2x32xf32>
    %72 = tpu.matmul %59, %2, %cst_49 {dimension_numbers = #tpu.dot_dimension_numbers<[1], [0], [0], [1], [0, 0, 1, 1], [], []>} : vector<2x32xf32>, vector<32x32xf32>, vector<2x32xf32> -> vector<2x32xf32>
    %73 = arith.addf %71, %72 : vector<2x32xf32>
    %74 = vector.broadcast %4 : vector<1x32xf32> to vector<2x32xf32>
    %75 = arith.addf %73, %74 : vector<2x32xf32>
    %76 = math.tanh %75 : vector<2x32xf32>
    %cst_50 = arith.constant dense<0.000000e+00> : vector<2x32xf32>
    %77 = tpu.matmul %59, %1, %cst_50 {dimension_numbers = #tpu.dot_dimension_numbers<[1], [0], [0], [1], [0, 0, 1, 1], [], []>} : vector<2x32xf32>, vector<32x32xf32>, vector<2x32xf32> -> vector<2x32xf32>
    %cst_51 = arith.constant dense<0.000000e+00> : vector<2x32xf32>
    %78 = tpu.matmul %65, %3, %cst_51 {dimension_numbers = #tpu.dot_dimension_numbers<[1], [0], [0], [1], [0, 0, 1, 1], [], []>} : vector<2x32xf32>, vector<32x32xf32>, vector<2x32xf32> -> vector<2x32xf32>
    %79 = arith.addf %77, %78 : vector<2x32xf32>
    %80 = vector.broadcast %5 : vector<1x32xf32> to vector<2x32xf32>
    %81 = arith.addf %79, %80 : vector<2x32xf32>
    %82 = math.tanh %81 : vector<2x32xf32>
    %cst_52 = arith.constant dense<0.000000e+00> : vector<2x8xf32>
    %83 = tpu.matmul %82, %6, %cst_52 {dimension_numbers = #tpu.dot_dimension_numbers<[1], [0], [0], [1], [0, 0, 1, 1], [], []>} : vector<2x32xf32>, vector<32x8xf32>, vector<2x8xf32> -> vector<2x8xf32>
    %84 = vector.broadcast %7 : vector<1x8xf32> to vector<2x8xf32>
    %85 = arith.addf %83, %84 : vector<2x8xf32>
    %c0_53 = arith.constant 0 : index
    %c24_54 = arith.constant 24 : index
    %86 = vector.load %arg10[%c0_53, %c24_54] : memref<2x64xf32, #tpu.memory_space<vmem>>, vector<2x8xf32>
    tpu.vector_store %arg10[%c0_53, %c24_54], %85 {strides = array<i32>} : memref<2x64xf32, #tpu.memory_space<vmem>>, vector<2x8xf32>,
    %c0_55 = arith.constant 0 : index
    %c40 = arith.constant 40 : index
    %87 = vector.load %arg0[%c0_55, %c40] : memref<2x64xf32, #tpu.memory_space<vmem>>, vector<2x8xf32>
    %cst_56 = arith.constant dense<0.000000e+00> : vector<2x32xf32>
    %88 = tpu.matmul %87, %0, %cst_56 {dimension_numbers = #tpu.dot_dimension_numbers<[1], [0], [0], [1], [0, 0, 1, 1], [], []>} : vector<2x8xf32>, vector<8x32xf32>, vector<2x32xf32> -> vector<2x32xf32>
    %cst_57 = arith.constant dense<0.000000e+00> : vector<2x32xf32>
    %89 = tpu.matmul %76, %2, %cst_57 {dimension_numbers = #tpu.dot_dimension_numbers<[1], [0], [0], [1], [0, 0, 1, 1], [], []>} : vector<2x32xf32>, vector<32x32xf32>, vector<2x32xf32> -> vector<2x32xf32>
    %90 = arith.addf %88, %89 : vector<2x32xf32>
    %91 = vector.broadcast %4 : vector<1x32xf32> to vector<2x32xf32>
    %92 = arith.addf %90, %91 : vector<2x32xf32>
    %93 = math.tanh %92 : vector<2x32xf32>
    %cst_58 = arith.constant dense<0.000000e+00> : vector<2x32xf32>
    %94 = tpu.matmul %76, %1, %cst_58 {dimension_numbers = #tpu.dot_dimension_numbers<[1], [0], [0], [1], [0, 0, 1, 1], [], []>} : vector<2x32xf32>, vector<32x32xf32>, vector<2x32xf32> -> vector<2x32xf32>
    %cst_59 = arith.constant dense<0.000000e+00> : vector<2x32xf32>
    %95 = tpu.matmul %82, %3, %cst_59 {dimension_numbers = #tpu.dot_dimension_numbers<[1], [0], [0], [1], [0, 0, 1, 1], [], []>} : vector<2x32xf32>, vector<32x32xf32>, vector<2x32xf32> -> vector<2x32xf32>
    %96 = arith.addf %94, %95 : vector<2x32xf32>
    %97 = vector.broadcast %5 : vector<1x32xf32> to vector<2x32xf32>
    %98 = arith.addf %96, %97 : vector<2x32xf32>
    %99 = math.tanh %98 : vector<2x32xf32>
    %cst_60 = arith.constant dense<0.000000e+00> : vector<2x8xf32>
    %100 = tpu.matmul %99, %6, %cst_60 {dimension_numbers = #tpu.dot_dimension_numbers<[1], [0], [0], [1], [0, 0, 1, 1], [], []>} : vector<2x32xf32>, vector<32x8xf32>, vector<2x8xf32> -> vector<2x8xf32>
    %101 = vector.broadcast %7 : vector<1x8xf32> to vector<2x8xf32>
    %102 = arith.addf %100, %101 : vector<2x8xf32>
    %c0_61 = arith.constant 0 : index
    %c32_62 = arith.constant 32 : index
    %103 = vector.load %arg10[%c0_61, %c32_62] : memref<2x64xf32, #tpu.memory_space<vmem>>, vector<2x8xf32>
    tpu.vector_store %arg10[%c0_61, %c32_62], %102 {strides = array<i32>} : memref<2x64xf32, #tpu.memory_space<vmem>>, vector<2x8xf32>,
    %c0_63 = arith.constant 0 : index
    %c48 = arith.constant 48 : index
    %104 = vector.load %arg0[%c0_63, %c48] : memref<2x64xf32, #tpu.memory_space<vmem>>, vector<2x8xf32>
    %cst_64 = arith.constant dense<0.000000e+00> : vector<2x32xf32>
    %105 = tpu.matmul %104, %0, %cst_64 {dimension_numbers = #tpu.dot_dimension_numbers<[1], [0], [0], [1], [0, 0, 1, 1], [], []>} : vector<2x8xf32>, vector<8x32xf32>, vector<2x32xf32> -> vector<2x32xf32>
    %cst_65 = arith.constant dense<0.000000e+00> : vector<2x32xf32>
    %106 = tpu.matmul %93, %2, %cst_65 {dimension_numbers = #tpu.dot_dimension_numbers<[1], [0], [0], [1], [0, 0, 1, 1], [], []>} : vector<2x32xf32>, vector<32x32xf32>, vector<2x32xf32> -> vector<2x32xf32>
    %107 = arith.addf %105, %106 : vector<2x32xf32>
    %108 = vector.broadcast %4 : vector<1x32xf32> to vector<2x32xf32>
    %109 = arith.addf %107, %108 : vector<2x32xf32>
    %110 = math.tanh %109 : vector<2x32xf32>
    %cst_66 = arith.constant dense<0.000000e+00> : vector<2x32xf32>
    %111 = tpu.matmul %93, %1, %cst_66 {dimension_numbers = #tpu.dot_dimension_numbers<[1], [0], [0], [1], [0, 0, 1, 1], [], []>} : vector<2x32xf32>, vector<32x32xf32>, vector<2x32xf32> -> vector<2x32xf32>
    %cst_67 = arith.constant dense<0.000000e+00> : vector<2x32xf32>
    %112 = tpu.matmul %99, %3, %cst_67 {dimension_numbers = #tpu.dot_dimension_numbers<[1], [0], [0], [1], [0, 0, 1, 1], [], []>} : vector<2x32xf32>, vector<32x32xf32>, vector<2x32xf32> -> vector<2x32xf32>
    %113 = arith.addf %111, %112 : vector<2x32xf32>
    %114 = vector.broadcast %5 : vector<1x32xf32> to vector<2x32xf32>
    %115 = arith.addf %113, %114 : vector<2x32xf32>
    %116 = math.tanh %115 : vector<2x32xf32>
    %cst_68 = arith.constant dense<0.000000e+00> : vector<2x8xf32>
    %117 = tpu.matmul %116, %6, %cst_68 {dimension_numbers = #tpu.dot_dimension_numbers<[1], [0], [0], [1], [0, 0, 1, 1], [], []>} : vector<2x32xf32>, vector<32x8xf32>, vector<2x8xf32> -> vector<2x8xf32>
    %118 = vector.broadcast %7 : vector<1x8xf32> to vector<2x8xf32>
    %119 = arith.addf %117, %118 : vector<2x8xf32>
    %c0_69 = arith.constant 0 : index
    %c40_70 = arith.constant 40 : index
    %120 = vector.load %arg10[%c0_69, %c40_70] : memref<2x64xf32, #tpu.memory_space<vmem>>, vector<2x8xf32>
    tpu.vector_store %arg10[%c0_69, %c40_70], %119 {strides = array<i32>} : memref<2x64xf32, #tpu.memory_space<vmem>>, vector<2x8xf32>,
    %c0_71 = arith.constant 0 : index
    %c56 = arith.constant 56 : index
    %121 = vector.load %arg0[%c0_71, %c56] : memref<2x64xf32, #tpu.memory_space<vmem>>, vector<2x8xf32>
    %cst_72 = arith.constant dense<0.000000e+00> : vector<2x32xf32>
    %122 = tpu.matmul %121, %0, %cst_72 {dimension_numbers = #tpu.dot_dimension_numbers<[1], [0], [0], [1], [0, 0, 1, 1], [], []>} : vector<2x8xf32>, vector<8x32xf32>, vector<2x32xf32> -> vector<2x32xf32>
    %cst_73 = arith.constant dense<0.000000e+00> : vector<2x32xf32>
    %123 = tpu.matmul %110, %2, %cst_73 {dimension_numbers = #tpu.dot_dimension_numbers<[1], [0], [0], [1], [0, 0, 1, 1], [], []>} : vector<2x32xf32>, vector<32x32xf32>, vector<2x32xf32> -> vector<2x32xf32>
    %124 = arith.addf %122, %123 : vector<2x32xf32>
    %125 = vector.broadcast %4 : vector<1x32xf32> to vector<2x32xf32>
    %126 = arith.addf %124, %125 : vector<2x32xf32>
    %127 = math.tanh %126 : vector<2x32xf32>
    %cst_74 = arith.constant dense<0.000000e+00> : vector<2x32xf32>
    %128 = tpu.matmul %110, %1, %cst_74 {dimension_numbers = #tpu.dot_dimension_numbers<[1], [0], [0], [1], [0, 0, 1, 1], [], []>} : vector<2x32xf32>, vector<32x32xf32>, vector<2x32xf32> -> vector<2x32xf32>
    %cst_75 = arith.constant dense<0.000000e+00> : vector<2x32xf32>
    %129 = tpu.matmul %116, %3, %cst_75 {dimension_numbers = #tpu.dot_dimension_numbers<[1], [0], [0], [1], [0, 0, 1, 1], [], []>} : vector<2x32xf32>, vector<32x32xf32>, vector<2x32xf32> -> vector<2x32xf32>
    %130 = arith.addf %128, %129 : vector<2x32xf32>
    %131 = vector.broadcast %5 : vector<1x32xf32> to vector<2x32xf32>
    %132 = arith.addf %130, %131 : vector<2x32xf32>
    %133 = math.tanh %132 : vector<2x32xf32>
    %cst_76 = arith.constant dense<0.000000e+00> : vector<2x8xf32>
    %134 = tpu.matmul %133, %6, %cst_76 {dimension_numbers = #tpu.dot_dimension_numbers<[1], [0], [0], [1], [0, 0, 1, 1], [], []>} : vector<2x32xf32>, vector<32x8xf32>, vector<2x8xf32> -> vector<2x8xf32>
    %135 = vector.broadcast %7 : vector<1x8xf32> to vector<2x8xf32>
    %136 = arith.addf %134, %135 : vector<2x8xf32>
    %c0_77 = arith.constant 0 : index
    %c48_78 = arith.constant 48 : index
    %137 = vector.load %arg10[%c0_77, %c48_78] : memref<2x64xf32, #tpu.memory_space<vmem>>, vector<2x8xf32>
    tpu.vector_store %arg10[%c0_77, %c48_78], %136 {strides = array<i32>} : memref<2x64xf32, #tpu.memory_space<vmem>>, vector<2x8xf32>,
    %cst_79 = arith.constant dense<0.000000e+00> : vector<2x32xf32>
    %138 = tpu.matmul %127, %1, %cst_79 {dimension_numbers = #tpu.dot_dimension_numbers<[1], [0], [0], [1], [0, 0, 1, 1], [], []>} : vector<2x32xf32>, vector<32x32xf32>, vector<2x32xf32> -> vector<2x32xf32>
    %cst_80 = arith.constant dense<0.000000e+00> : vector<2x32xf32>
    %139 = tpu.matmul %133, %3, %cst_80 {dimension_numbers = #tpu.dot_dimension_numbers<[1], [0], [0], [1], [0, 0, 1, 1], [], []>} : vector<2x32xf32>, vector<32x32xf32>, vector<2x32xf32> -> vector<2x32xf32>
    %140 = arith.addf %138, %139 : vector<2x32xf32>
    %141 = vector.broadcast %5 : vector<1x32xf32> to vector<2x32xf32>
    %142 = arith.addf %140, %141 : vector<2x32xf32>
    %143 = math.tanh %142 : vector<2x32xf32>
    %cst_81 = arith.constant dense<0.000000e+00> : vector<2x8xf32>
    %144 = tpu.matmul %143, %6, %cst_81 {dimension_numbers = #tpu.dot_dimension_numbers<[1], [0], [0], [1], [0, 0, 1, 1], [], []>} : vector<2x32xf32>, vector<32x8xf32>, vector<2x8xf32> -> vector<2x8xf32>
    %145 = vector.broadcast %7 : vector<1x8xf32> to vector<2x8xf32>
    %146 = arith.addf %144, %145 : vector<2x8xf32>
    %c0_82 = arith.constant 0 : index
    %c56_83 = arith.constant 56 : index
    %147 = vector.load %arg10[%c0_82, %c56_83] : memref<2x64xf32, #tpu.memory_space<vmem>>, vector<2x8xf32>
    tpu.vector_store %arg10[%c0_82, %c56_83], %146 {strides = array<i32>} : memref<2x64xf32, #tpu.memory_space<vmem>>, vector<2x8xf32>,
    %148 = vector.shape_cast %127 : vector<2x32xf32> to vector<1x2x32xf32>
    %149 = vector.shape_cast %143 : vector<2x32xf32> to vector<1x2x32xf32>
    %150 = tpu.concatenate %148, %149 in 0 : vector<1x2x32xf32>, vector<1x2x32xf32> -> vector<2x2x32xf32>
    %c0_84 = arith.constant 0 : index
    %c0_85 = arith.constant 0 : index
    %c0_86 = arith.constant 0 : index
    %151 = vector.load %arg11[%c0_84, %c0_85, %c0_86] : memref<2x2x32xf32, #tpu.memory_space<vmem>>, vector<2x2x32xf32>
    tpu.vector_store %arg11[%c0_84, %c0_85, %c0_86], %150 {strides = array<i32>} : memref<2x2x32xf32, #tpu.memory_space<vmem>>, vector<2x2x32xf32>,
    return
  }
}

</mosaic_0001>

<llo_original>
// kernel: my_rnn_forward.1
$region0: #{my_rnn_forward.1}
  #allocation0 [shape = 'u32[]', space=smem, size = 0x4, offset = 0x4, fixed_abs, tag = 'smem constant byte address 0x4 - core index']
  #allocation1 [shape = 'u32[72,128]{1,0:T(1,128)}', space=vmem, size = 0x9000, scoped, tag = 'internal scratch']
  %s0 = inlined_call_operand.vmem [shape: f32[2,64], index: 0, kind: input, shape index: {}]
  %s1 = inlined_call_operand.vmem [shape: f32[2,2,32], index: 1, kind: input, shape index: {}]
  %s2 = inlined_call_operand.vmem [shape: f32[8,32], index: 2, kind: input, shape index: {}]
  %s3 = inlined_call_operand.vmem [shape: f32[32,32], index: 3, kind: input, shape index: {}]
  %s4 = inlined_call_operand.vmem [shape: f32[1,32], index: 4, kind: input, shape index: {}]
  %s5 = inlined_call_operand.hbm [shape: f32[32,32], index: 5, kind: input, shape index: {}]
  %s6 = inlined_call_operand.hbm [shape: f32[32,32], index: 6, kind: input, shape index: {}]
  %s7 = inlined_call_operand.vmem [shape: f32[1,32], index: 7, kind: input, shape index: {}]
  %s8 = inlined_call_operand.vmem [shape: f32[32,8], index: 8, kind: input, shape index: {}]
  %s9 = inlined_call_operand.vmem [shape: f32[1,8], index: 9, kind: input, shape index: {}]
  %s10 = inlined_call_operand.vmem [shape: f32[2,64], index: 10, kind: output, shape index: {0}]
  %s11 = inlined_call_operand.hbm [shape: f32[2,2,32], index: 11, kind: output, shape index: {1}]
  %12 = xla_tuple %s10, %s11
  %s13 = sld [smem:[#allocation0]]
  $region66: #{my_rnn_forward.1} parent=0
    _
  %s15 = ssub.s32 1, %s13
  %s16 = scalar_select 0, %s15, %s13
  $region1: #{my_rnn_forward.1} parent=0
    #allocation2 [shape = 'u8[16384]{0}', space=vmem, size = 0x4000, scoped, tag = 'input window, operand 5, single buffered']
    #allocation3 [shape = 's32[1]{0}', space=sflag, size = 0x4, scoped, tag = 'scoped memory for my_rnn_forward.1']
    #allocation4 [shape = 's32[1]{0}', space=sflag, size = 0x4, scoped, tag = 'scoped memory for my_rnn_forward.1']
    #allocation5 [shape = 'u8[16384]{0}', space=vmem, size = 0x4000, scoped, tag = 'input window, operand 6, single buffered']
    #allocation6 [shape = 's32[1]{0}', space=sflag, size = 0x4, scoped, tag = 'scoped memory for my_rnn_forward.1']
    #allocation7 [shape = 'u8[2048]{0}', space=vmem, size = 0x800, scoped, tag = 'output window, operand 1, single buffered']
    %17 = vsyncpa [#allocation3], 0
    %18 = vsyncpa [#allocation6], 0
    %19 = vsyncpa [#allocation4], 0
    // Predicated region
    $region2: #{my_rnn_forward.1} parent=1 // pred_check
      _
    $region3: #{my_rnn_forward.1} parent=1 // pred_check_branch
      %21 = sbr.rel (0) target = $region5
    $region4: #{my_rnn_forward.1} parent=1 // pred_region
      _
    $region5: #{my_rnn_forward.1} parent=1 // pred_fallthru
      _
    // Predicated region
    $region6: #{my_rnn_forward.1} parent=1 // pred_check
      _
    $region7: #{my_rnn_forward.1} parent=1 // pred_check_branch
      %23 = sbr.rel (0) target = $region9
    $region8: #{my_rnn_forward.1} parent=1 // pred_region
      _
    $region9: #{my_rnn_forward.1} parent=1 // pred_fallthru
      _
    // Predicated region
    $region10: #{my_rnn_forward.1} parent=1 // pred_check
      _
    $region11: #{my_rnn_forward.1} parent=1 // pred_check_branch
      %25 = sbr.rel (0) target = $region13
    $region12: #{my_rnn_forward.1} parent=1 // pred_region
      _
    $region13: #{my_rnn_forward.1} parent=1 // pred_fallthru
      _
    // Predicated region
    $region14: #{my_rnn_forward.1} parent=1 // pred_check
      _
    $region15: #{my_rnn_forward.1} parent=1 // pred_check_branch
      %27 = sbr.rel (0) target = $region17
    $region16: #{my_rnn_forward.1} parent=1 // pred_region
      _
    $region17: #{my_rnn_forward.1} parent=1 // pred_fallthru
      _
    // Predicated region
    $region18: #{my_rnn_forward.1} parent=1 // pred_check
      _
    $region19: #{my_rnn_forward.1} parent=1 // pred_check_branch
      %29 = sbr.rel (0) target = $region21
    $region20: #{my_rnn_forward.1} parent=1 // pred_region
      _
    $region21: #{my_rnn_forward.1} parent=1 // pred_fallthru
      _
    // Predicated region
    $region22: #{my_rnn_forward.1} parent=1 // pred_check
      _
    $region23: #{my_rnn_forward.1} parent=1 // pred_check_branch
      %31 = sbr.rel (0) target = $region25
    $region24: #{my_rnn_forward.1} parent=1 // pred_region
      %33 = vsyncadd [#allocation3], 0
      %s34 = sshll.u32 %s5, 4
      %s35 = int_to_ptr.hbm [resolvable:$true] %s34
      %s36 = sshll.u32 [#allocation2], 4
      %s37 = int_to_ptr.vmem [resolvable:$true] %s36
      %42 = dma.hbm_to_vmem [thread:$0]  %s35, 512, %s37, [#allocation3], 128, 128, 8
    $region25: #{my_rnn_forward.1} parent=1 // pred_fallthru
      _
    // Predicated region
    $region26: #{my_rnn_forward.1} parent=1 // pred_check
      _
    $region27: #{my_rnn_forward.1} parent=1 // pred_check_branch
      %44 = sbr.rel (0) target = $region29
    $region28: #{my_rnn_forward.1} parent=1 // pred_region
      %46 = vsyncadd [#allocation6], 0
      %s47 = sshll.u32 %s6, 4
      %s48 = int_to_ptr.hbm [resolvable:$true] %s47
      %s49 = sshll.u32 [#allocation5], 4
      %s50 = int_to_ptr.vmem [resolvable:$true] %s49
      %55 = dma.hbm_to_vmem [thread:$0]  %s48, 512, %s50, [#allocation6], 128, 128, 8
    $region29: #{my_rnn_forward.1} parent=1 // pred_fallthru
      _
    // Predicated region
    $region30: #{my_rnn_forward.1} parent=1 // pred_check
      _
    $region31: #{my_rnn_forward.1} parent=1 // pred_check_branch
      %57 = sbr.rel (0) target = $region33
    $region32: #{my_rnn_forward.1} parent=1 // pred_region
      _
    $region33: #{my_rnn_forward.1} parent=1 // pred_fallthru
      _
    // Predicated region
    $region34: #{my_rnn_forward.1} parent=1 // pred_check
      _
    $region35: #{my_rnn_forward.1} parent=1 // pred_check_branch
      %59 = sbr.rel (0) target = $region37
    $region36: #{my_rnn_forward.1} parent=1 // pred_region
      _
    $region37: #{my_rnn_forward.1} parent=1 // pred_fallthru
      _
    // Predicated region
    $region38: #{my_rnn_forward.1} parent=1 // pred_check
      _
    $region39: #{my_rnn_forward.1} parent=1 // pred_check_branch
      %61 = sbr.rel (0) target = $region41
    $region40: #{my_rnn_forward.1} parent=1 // pred_region
      _
    $region41: #{my_rnn_forward.1} parent=1 // pred_fallthru
      _
    // Predicated region
    $region42: #{my_rnn_forward.1} parent=1 // pred_check
      _
    $region43: #{my_rnn_forward.1} parent=1 // pred_check_branch
      %63 = sbr.rel (0) target = $region45
    $region44: #{my_rnn_forward.1} parent=1 // pred_region
      %65 = dma.done [#allocation3], 512
    $region45: #{my_rnn_forward.1} parent=1 // pred_fallthru
      _
    // Predicated region
    $region46: #{my_rnn_forward.1} parent=1 // pred_check
      _
    $region47: #{my_rnn_forward.1} parent=1 // pred_check_branch
      %67 = sbr.rel (0) target = $region49
    $region48: #{my_rnn_forward.1} parent=1 // pred_region
      %69 = dma.done [#allocation6], 512
    $region49: #{my_rnn_forward.1} parent=1 // pred_fallthru
      _
    %v70 = vld [vmem:[%s2] sm:$0xff]
    %v71 = vld [vmem:[#allocation2] sm:$0xff]
    %v72 = vld [vmem:[#allocation2 + $0x8] sm:$0xff]
    %v73 = vld [vmem:[#allocation2 + $0x10] sm:$0xff]
    %v74 = vld [vmem:[#allocation2 + $0x18] sm:$0xff]
    %v75 = vld [vmem:[%s3] sm:$0xff]
    %v76 = vld [vmem:[%s3 + $0x8] sm:$0xff]
    %v77 = vld [vmem:[%s3 + $0x10] sm:$0xff]
    %v78 = vld [vmem:[%s3 + $0x18] sm:$0xff]
    %v79 = vld [vmem:[#allocation5] sm:$0xff]
    %v80 = vld [vmem:[#allocation5 + $0x8] sm:$0xff]
    %v81 = vld [vmem:[#allocation5 + $0x10] sm:$0xff]
    %v82 = vld [vmem:[#allocation5 + $0x18] sm:$0xff]
    %v83 = vld [vmem:[%s4] sm:$0x1]
    %v84 = vld [vmem:[%s7] sm:$0x1]
    %v85 = vld [vmem:[%s8] sm:$0xff]
    %v86 = vld [vmem:[%s8 + $0x8] sm:$0xff]
    %v87 = vld [vmem:[%s8 + $0x10] sm:$0xff]
    %v88 = vld [vmem:[%s8 + $0x18] sm:$0xff]
    %v89 = vld [vmem:[%s9] sm:$0x1]
    %v90 = vld [vmem:[%s1] sm:$0x3]
    %s91 = scalar_lea.vmem %s1, 2
    %v92 = vld [vmem:[%s91] sm:$0x3]
    %v93 = vld [vmem:[%s0] sm:$0x3]
    %vm94 = vcmask 261120
    %v96 = vsel %vm94, %v90, 0
    %98 = vmatpush.msra.mxu0 0.0
    %99 = vmatpush.msra.mxu0 0.0
    %100 = vmatpush.msra.mxu0 0.0
    %101 = vmatpush.msra.mxu0 0.0
    %102 = vmatpush.msra.mxu0 0.0
    %103 = vmatpush.msra.mxu0 0.0
    %104 = vmatpush.msra.mxu0 0.0
    %105 = vmatpush.msra.mxu0 0.0
    %106 = vmatpush.msra.mxu0 0.0
    %107 = vmatpush.msra.mxu0 0.0
    %108 = vmatpush.msra.mxu0 0.0
    %109 = vmatpush.msra.mxu0 0.0
    %110 = vmatpush.msra.mxu0 %v78
    %111 = vmatpush.msra.mxu0 %v77
    %112 = vmatpush.msra.mxu0 %v76
    %113 = vmatpush.msra.mxu0 %v75
    %114 = vmatmul.f32.gmra.mxu0 %v96
    %v115 = vpop.f32.mrf.mxu0
    %v116 = vadd.f32 0.0, %v115
    %117 = vdwg.mxu0
    %vm118 = vcmask 64512
    %v120 = vsel %vm118, %v93, 0
    %122 = vmatpush.msra.mxu0 0.0
    %123 = vmatpush.msra.mxu0 0.0
    %124 = vmatpush.msra.mxu0 0.0
    %125 = vmatpush.msra.mxu0 0.0
    %126 = vmatpush.msra.mxu0 0.0
    %127 = vmatpush.msra.mxu0 0.0
    %128 = vmatpush.msra.mxu0 0.0
    %129 = vmatpush.msra.mxu0 0.0
    %130 = vmatpush.msra.mxu0 0.0
    %131 = vmatpush.msra.mxu0 0.0
    %132 = vmatpush.msra.mxu0 0.0
    %133 = vmatpush.msra.mxu0 0.0
    %134 = vmatpush.msra.mxu0 0.0
    %135 = vmatpush.msra.mxu0 0.0
    %136 = vmatpush.msra.mxu0 0.0
    %137 = vmatpush.msra.mxu0 %v70
    %138 = vmatmul.f32.gmra.mxu0 %v120
    %v139 = vpop.f32.mrf.mxu0
    %v140 = vadd.f32 %v116, %v139
    %141 = vdwg.mxu0
    %v143 = vperm.slane %v83, 0
    %v145 = vadd.f32 %v140, %v143
    %v146 = vtanh.pop %v145
    %v148 = vsel %vm94, %v146, 0
    %150 = vmatpush.msra.mxu0 0.0
    %151 = vmatpush.msra.mxu0 0.0
    %152 = vmatpush.msra.mxu0 0.0
    %153 = vmatpush.msra.mxu0 0.0
    %154 = vmatpush.msra.mxu0 0.0
    %155 = vmatpush.msra.mxu0 0.0
    %156 = vmatpush.msra.mxu0 0.0
    %157 = vmatpush.msra.mxu0 0.0
    %158 = vmatpush.msra.mxu0 0.0
    %159 = vmatpush.msra.mxu0 0.0
    %160 = vmatpush.msra.mxu0 0.0
    %161 = vmatpush.msra.mxu0 0.0
    %162 = vmatpush.msra.mxu0 %v78
    %163 = vmatpush.msra.mxu0 %v77
    %164 = vmatpush.msra.mxu0 %v76
    %165 = vmatpush.msra.mxu0 %v75
    %166 = vmatmul.f32.gmra.mxu0 %v148
    %v167 = vpop.f32.mrf.mxu0
    %v168 = vadd.f32 0.0, %v167
    %169 = vdwg.mxu0
    %170 = vrot.lane.b32.xlu0 %v93, 120
    %v171 = vpop.permute.xlu0 %170
    %v172 = vsel %vm118, %v171, 0
    %174 = vmatpush.msra.mxu0 0.0
    %175 = vmatpush.msra.mxu0 0.0
    %176 = vmatpush.msra.mxu0 0.0
    %177 = vmatpush.msra.mxu0 0.0
    %178 = vmatpush.msra.mxu0 0.0
    %179 = vmatpush.msra.mxu0 0.0
    %180 = vmatpush.msra.mxu0 0.0
    %181 = vmatpush.msra.mxu0 0.0
    %182 = vmatpush.msra.mxu0 0.0
    %183 = vmatpush.msra.mxu0 0.0
    %184 = vmatpush.msra.mxu0 0.0
    %185 = vmatpush.msra.mxu0 0.0
    %186 = vmatpush.msra.mxu0 0.0
    %187 = vmatpush.msra.mxu0 0.0
    %188 = vmatpush.msra.mxu0 0.0
    %189 = vmatpush.msra.mxu0 %v70
    %190 = vmatmul.f32.gmra.mxu0 %v172
    %v191 = vpop.f32.mrf.mxu0
    %v192 = vadd.f32 %v168, %v191
    %193 = vdwg.mxu0
    %v194 = vadd.f32 %v192, %v143
    %v195 = vtanh.pop %v194
    %v197 = vsel %vm94, %v92, 0
    %199 = vmatpush.msra.mxu0 0.0
    %200 = vmatpush.msra.mxu0 0.0
    %201 = vmatpush.msra.mxu0 0.0
    %202 = vmatpush.msra.mxu0 0.0
    %203 = vmatpush.msra.mxu0 0.0
    %204 = vmatpush.msra.mxu0 0.0
    %205 = vmatpush.msra.mxu0 0.0
    %206 = vmatpush.msra.mxu0 0.0
    %207 = vmatpush.msra.mxu0 0.0
    %208 = vmatpush.msra.mxu0 0.0
    %209 = vmatpush.msra.mxu0 0.0
    %210 = vmatpush.msra.mxu0 0.0
    %211 = vmatpush.msra.mxu0 %v82
    %212 = vmatpush.msra.mxu0 %v81
    %213 = vmatpush.msra.mxu0 %v80
    %214 = vmatpush.msra.mxu0 %v79
    %215 = vmatmul.f32.gmra.mxu0 %v197
    %v216 = vpop.f32.mrf.mxu0
    %v217 = vadd.f32 0.0, %v216
    %218 = vdwg.mxu0
    %219 = vmatpush.msra.mxu0 0.0
    %220 = vmatpush.msra.mxu0 0.0
    %221 = vmatpush.msra.mxu0 0.0
    %222 = vmatpush.msra.mxu0 0.0
    %223 = vmatpush.msra.mxu0 0.0
    %224 = vmatpush.msra.mxu0 0.0
    %225 = vmatpush.msra.mxu0 0.0
    %226 = vmatpush.msra.mxu0 0.0
    %227 = vmatpush.msra.mxu0 0.0
    %228 = vmatpush.msra.mxu0 0.0
    %229 = vmatpush.msra.mxu0 0.0
    %230 = vmatpush.msra.mxu0 0.0
    %231 = vmatpush.msra.mxu0 %v74
    %232 = vmatpush.msra.mxu0 %v73
    %233 = vmatpush.msra.mxu0 %v72
    %234 = vmatpush.msra.mxu0 %v71
    %235 = vmatmul.f32.gmra.mxu0 %v148
    %v236 = vpop.f32.mrf.mxu0
    %v237 = vadd.f32 %v217, %v236
    %238 = vdwg.mxu0
    %v240 = vperm.slane %v84, 0
    %v242 = vadd.f32 %v237, %v240
    %v243 = vtanh.pop %v242
    %v245 = vperm.slane %v89, 0
    %v248 = vsel %vm94, %v243, 0
    %250 = vmatpush.msra.mxu0 0.0
    %251 = vmatpush.msra.mxu0 0.0
    %252 = vmatpush.msra.mxu0 0.0
    %253 = vmatpush.msra.mxu0 0.0
    %254 = vmatpush.msra.mxu0 0.0
    %255 = vmatpush.msra.mxu0 0.0
    %256 = vmatpush.msra.mxu0 0.0
    %257 = vmatpush.msra.mxu0 0.0
    %258 = vmatpush.msra.mxu0 0.0
    %259 = vmatpush.msra.mxu0 0.0
    %260 = vmatpush.msra.mxu0 0.0
    %261 = vmatpush.msra.mxu0 0.0
    %262 = vmatpush.msra.mxu0 %v88
    %263 = vmatpush.msra.mxu0 %v87
    %264 = vmatpush.msra.mxu0 %v86
    %265 = vmatpush.msra.mxu0 %v85
    %266 = vmatmul.f32.gmra.mxu0 %v248
    %v267 = vpop.f32.mrf.mxu0
    %v268 = vadd.f32 %v245, %v267
    %269 = vdwg.mxu0
    %vm270 = vcmask 58368
    %271 = vst.msk [vmem:[%s10] sm:$0x3] %vm270, %v268
    %v272 = vld [vmem:[%s0] sm:$0x3]
    %v274 = vsel %vm94, %v195, 0
    %276 = vmatpush.msra.mxu0 0.0
    %277 = vmatpush.msra.mxu0 0.0
    %278 = vmatpush.msra.mxu0 0.0
    %279 = vmatpush.msra.mxu0 0.0
    %280 = vmatpush.msra.mxu0 0.0
    %281 = vmatpush.msra.mxu0 0.0
    %282 = vmatpush.msra.mxu0 0.0
    %283 = vmatpush.msra.mxu0 0.0
    %284 = vmatpush.msra.mxu0 0.0
    %285 = vmatpush.msra.mxu0 0.0
    %286 = vmatpush.msra.mxu0 0.0
    %287 = vmatpush.msra.mxu0 0.0
    %288 = vmatpush.msra.mxu0 %v78
    %289 = vmatpush.msra.mxu0 %v77
    %290 = vmatpush.msra.mxu0 %v76
    %291 = vmatpush.msra.mxu0 %v75
    %292 = vmatmul.f32.gmra.mxu0 %v274
    %v293 = vpop.f32.mrf.mxu0
    %v294 = vadd.f32 0.0, %v293
    %295 = vdwg.mxu0
    %297 = vrot.lane.b32.xlu0 %v272, 112
    %v298 = vpop.permute.xlu0 %297
    %v299 = vsel %vm118, %v298, 0
    %301 = vmatpush.msra.mxu0 0.0
    %302 = vmatpush.msra.mxu0 0.0
    %303 = vmatpush.msra.mxu0 0.0
    %304 = vmatpush.msra.mxu0 0.0
    %305 = vmatpush.msra.mxu0 0.0
    %306 = vmatpush.msra.mxu0 0.0
    %307 = vmatpush.msra.mxu0 0.0
    %308 = vmatpush.msra.mxu0 0.0
    %309 = vmatpush.msra.mxu0 0.0
    %310 = vmatpush.msra.mxu0 0.0
    %311 = vmatpush.msra.mxu0 0.0
    %312 = vmatpush.msra.mxu0 0.0
    %313 = vmatpush.msra.mxu0 0.0
    %314 = vmatpush.msra.mxu0 0.0
    %315 = vmatpush.msra.mxu0 0.0
    %316 = vmatpush.msra.mxu0 %v70
    %317 = vmatmul.f32.gmra.mxu0 %v299
    %v318 = vpop.f32.mrf.mxu0
    %v319 = vadd.f32 %v294, %v318
    %320 = vdwg.mxu0
    %v321 = vadd.f32 %v319, %v143
    %v322 = vtanh.pop %v321
    %323 = vmatpush.msra.mxu0 0.0
    %324 = vmatpush.msra.mxu0 0.0
    %325 = vmatpush.msra.mxu0 0.0
    %326 = vmatpush.msra.mxu0 0.0
    %327 = vmatpush.msra.mxu0 0.0
    %328 = vmatpush.msra.mxu0 0.0
    %329 = vmatpush.msra.mxu0 0.0
    %330 = vmatpush.msra.mxu0 0.0
    %331 = vmatpush.msra.mxu0 0.0
    %332 = vmatpush.msra.mxu0 0.0
    %333 = vmatpush.msra.mxu0 0.0
    %334 = vmatpush.msra.mxu0 0.0
    %335 = vmatpush.msra.mxu0 %v82
    %336 = vmatpush.msra.mxu0 %v81
    %337 = vmatpush.msra.mxu0 %v80
    %338 = vmatpush.msra.mxu0 %v79
    %339 = vmatmul.f32.gmra.mxu0 %v248
    %v340 = vpop.f32.mrf.mxu0
    %v341 = vadd.f32 0.0, %v340
    %342 = vdwg.mxu0
    %343 = vmatpush.msra.mxu0 0.0
    %344 = vmatpush.msra.mxu0 0.0
    %345 = vmatpush.msra.mxu0 0.0
    %346 = vmatpush.msra.mxu0 0.0
    %347 = vmatpush.msra.mxu0 0.0
    %348 = vmatpush.msra.mxu0 0.0
    %349 = vmatpush.msra.mxu0 0.0
    %350 = vmatpush.msra.mxu0 0.0
    %351 = vmatpush.msra.mxu0 0.0
    %352 = vmatpush.msra.mxu0 0.0
    %353 = vmatpush.msra.mxu0 0.0
    %354 = vmatpush.msra.mxu0 0.0
    %355 = vmatpush.msra.mxu0 %v74
    %356 = vmatpush.msra.mxu0 %v73
    %357 = vmatpush.msra.mxu0 %v72
    %358 = vmatpush.msra.mxu0 %v71
    %359 = vmatmul.f32.gmra.mxu0 %v274
    %v360 = vpop.f32.mrf.mxu0
    %v361 = vadd.f32 %v341, %v360
    %362 = vdwg.mxu0
    %v363 = vadd.f32 %v361, %v240
    %v364 = vtanh.pop %v363
    %v366 = vsel %vm94, %v364, 0
    %368 = vmatpush.msra.mxu0 0.0
    %369 = vmatpush.msra.mxu0 0.0
    %370 = vmatpush.msra.mxu0 0.0
    %371 = vmatpush.msra.mxu0 0.0
    %372 = vmatpush.msra.mxu0 0.0
    %373 = vmatpush.msra.mxu0 0.0
    %374 = vmatpush.msra.mxu0 0.0
    %375 = vmatpush.msra.mxu0 0.0
    %376 = vmatpush.msra.mxu0 0.0
    %377 = vmatpush.msra.mxu0 0.0
    %378 = vmatpush.msra.mxu0 0.0
    %379 = vmatpush.msra.mxu0 0.0
    %380 = vmatpush.msra.mxu0 %v88
    %381 = vmatpush.msra.mxu0 %v87
    %382 = vmatpush.msra.mxu0 %v86
    %383 = vmatpush.msra.mxu0 %v85
    %384 = vmatmul.f32.gmra.mxu0 %v366
    %v385 = vpop.f32.mrf.mxu0
    %v386 = vadd.f32 %v245, %v385
    %387 = vdwg.mxu0
    %389 = vrot.lane.b32.xlu0 %v386, 8
    %v390 = vpop.permute.xlu0 %389
    %vm392 = vcmask 123968
    %393 = vst.msk [vmem:[%s10] sm:$0x3] %vm392, %v390
    %v394 = vld [vmem:[%s0] sm:$0x3]
    %v396 = vsel %vm94, %v322, 0
    %398 = vmatpush.msra.mxu0 0.0
    %399 = vmatpush.msra.mxu0 0.0
    %400 = vmatpush.msra.mxu0 0.0
    %401 = vmatpush.msra.mxu0 0.0
    %402 = vmatpush.msra.mxu0 0.0
    %403 = vmatpush.msra.mxu0 0.0
    %404 = vmatpush.msra.mxu0 0.0
    %405 = vmatpush.msra.mxu0 0.0
    %406 = vmatpush.msra.mxu0 0.0
    %407 = vmatpush.msra.mxu0 0.0
    %408 = vmatpush.msra.mxu0 0.0
    %409 = vmatpush.msra.mxu0 0.0
    %410 = vmatpush.msra.mxu0 %v78
    %411 = vmatpush.msra.mxu0 %v77
    %412 = vmatpush.msra.mxu0 %v76
    %413 = vmatpush.msra.mxu0 %v75
    %414 = vmatmul.f32.gmra.mxu0 %v396
    %v415 = vpop.f32.mrf.mxu0
    %v416 = vadd.f32 0.0, %v415
    %417 = vdwg.mxu0
    %419 = vrot.lane.b32.xlu0 %v394, 104
    %v420 = vpop.permute.xlu0 %419
    %v421 = vsel %vm118, %v420, 0
    %423 = vmatpush.msra.mxu0 0.0
    %424 = vmatpush.msra.mxu0 0.0
    %425 = vmatpush.msra.mxu0 0.0
    %426 = vmatpush.msra.mxu0 0.0
    %427 = vmatpush.msra.mxu0 0.0
    %428 = vmatpush.msra.mxu0 0.0
    %429 = vmatpush.msra.mxu0 0.0
    %430 = vmatpush.msra.mxu0 0.0
    %431 = vmatpush.msra.mxu0 0.0
    %432 = vmatpush.msra.mxu0 0.0
    %433 = vmatpush.msra.mxu0 0.0
    %434 = vmatpush.msra.mxu0 0.0
    %435 = vmatpush.msra.mxu0 0.0
    %436 = vmatpush.msra.mxu0 0.0
    %437 = vmatpush.msra.mxu0 0.0
    %438 = vmatpush.msra.mxu0 %v70
    %439 = vmatmul.f32.gmra.mxu0 %v421
    %v440 = vpop.f32.mrf.mxu0
    %v441 = vadd.f32 %v416, %v440
    %442 = vdwg.mxu0
    %v443 = vadd.f32 %v441, %v143
    %v444 = vtanh.pop %v443
    %445 = vmatpush.msra.mxu0 0.0
    %446 = vmatpush.msra.mxu0 0.0
    %447 = vmatpush.msra.mxu0 0.0
    %448 = vmatpush.msra.mxu0 0.0
    %449 = vmatpush.msra.mxu0 0.0
    %450 = vmatpush.msra.mxu0 0.0
    %451 = vmatpush.msra.mxu0 0.0
    %452 = vmatpush.msra.mxu0 0.0
    %453 = vmatpush.msra.mxu0 0.0
    %454 = vmatpush.msra.mxu0 0.0
    %455 = vmatpush.msra.mxu0 0.0
    %456 = vmatpush.msra.mxu0 0.0
    %457 = vmatpush.msra.mxu0 %v82
    %458 = vmatpush.msra.mxu0 %v81
    %459 = vmatpush.msra.mxu0 %v80
    %460 = vmatpush.msra.mxu0 %v79
    %461 = vmatmul.f32.gmra.mxu0 %v366
    %v462 = vpop.f32.mrf.mxu0
    %v463 = vadd.f32 0.0, %v462
    %464 = vdwg.mxu0
    %465 = vmatpush.msra.mxu0 0.0
    %466 = vmatpush.msra.mxu0 0.0
    %467 = vmatpush.msra.mxu0 0.0
    %468 = vmatpush.msra.mxu0 0.0
    %469 = vmatpush.msra.mxu0 0.0
    %470 = vmatpush.msra.mxu0 0.0
    %471 = vmatpush.msra.mxu0 0.0
    %472 = vmatpush.msra.mxu0 0.0
    %473 = vmatpush.msra.mxu0 0.0
    %474 = vmatpush.msra.mxu0 0.0
    %475 = vmatpush.msra.mxu0 0.0
    %476 = vmatpush.msra.mxu0 0.0
    %477 = vmatpush.msra.mxu0 %v74
    %478 = vmatpush.msra.mxu0 %v73
    %479 = vmatpush.msra.mxu0 %v72
    %480 = vmatpush.msra.mxu0 %v71
    %481 = vmatmul.f32.gmra.mxu0 %v396
    %v482 = vpop.f32.mrf.mxu0
    %v483 = vadd.f32 %v463, %v482
    %484 = vdwg.mxu0
    %v485 = vadd.f32 %v483, %v240
    %v486 = vtanh.pop %v485
    %v488 = vsel %vm94, %v486, 0
    %490 = vmatpush.msra.mxu0 0.0
    %491 = vmatpush.msra.mxu0 0.0
    %492 = vmatpush.msra.mxu0 0.0
    %493 = vmatpush.msra.mxu0 0.0
    %494 = vmatpush.msra.mxu0 0.0
    %495 = vmatpush.msra.mxu0 0.0
    %496 = vmatpush.msra.mxu0 0.0
    %497 = vmatpush.msra.mxu0 0.0
    %498 = vmatpush.msra.mxu0 0.0
    %499 = vmatpush.msra.mxu0 0.0
    %500 = vmatpush.msra.mxu0 0.0
    %501 = vmatpush.msra.mxu0 0.0
    %502 = vmatpush.msra.mxu0 %v88
    %503 = vmatpush.msra.mxu0 %v87
    %504 = vmatpush.msra.mxu0 %v86
    %505 = vmatpush.msra.mxu0 %v85
    %506 = vmatmul.f32.gmra.mxu0 %v488
    %v507 = vpop.f32.mrf.mxu0
    %v508 = vadd.f32 %v245, %v507
    %509 = vdwg.mxu0
    %511 = vrot.lane.b32.xlu0 %v508, 16
    %v512 = vpop.permute.xlu0 %511
    %vm514 = vcmask 189568
    %515 = vst.msk [vmem:[%s10] sm:$0x3] %vm514, %v512
    %v516 = vld [vmem:[%s0] sm:$0x3]
    %v518 = vsel %vm94, %v444, 0
    %520 = vmatpush.msra.mxu0 0.0
    %521 = vmatpush.msra.mxu0 0.0
    %522 = vmatpush.msra.mxu0 0.0
    %523 = vmatpush.msra.mxu0 0.0
    %524 = vmatpush.msra.mxu0 0.0
    %525 = vmatpush.msra.mxu0 0.0
    %526 = vmatpush.msra.mxu0 0.0
    %527 = vmatpush.msra.mxu0 0.0
    %528 = vmatpush.msra.mxu0 0.0
    %529 = vmatpush.msra.mxu0 0.0
    %530 = vmatpush.msra.mxu0 0.0
    %531 = vmatpush.msra.mxu0 0.0
    %532 = vmatpush.msra.mxu0 %v78
    %533 = vmatpush.msra.mxu0 %v77
    %534 = vmatpush.msra.mxu0 %v76
    %535 = vmatpush.msra.mxu0 %v75
    %536 = vmatmul.f32.gmra.mxu0 %v518
    %v537 = vpop.f32.mrf.mxu0
    %v538 = vadd.f32 0.0, %v537
    %539 = vdwg.mxu0
    %541 = vrot.lane.b32.xlu0 %v516, 96
    %v542 = vpop.permute.xlu0 %541
    %v543 = vsel %vm118, %v542, 0
    %545 = vmatpush.msra.mxu0 0.0
    %546 = vmatpush.msra.mxu0 0.0
    %547 = vmatpush.msra.mxu0 0.0
    %548 = vmatpush.msra.mxu0 0.0
    %549 = vmatpush.msra.mxu0 0.0
    %550 = vmatpush.msra.mxu0 0.0
    %551 = vmatpush.msra.mxu0 0.0
    %552 = vmatpush.msra.mxu0 0.0
    %553 = vmatpush.msra.mxu0 0.0
    %554 = vmatpush.msra.mxu0 0.0
    %555 = vmatpush.msra.mxu0 0.0
    %556 = vmatpush.msra.mxu0 0.0
    %557 = vmatpush.msra.mxu0 0.0
    %558 = vmatpush.msra.mxu0 0.0
    %559 = vmatpush.msra.mxu0 0.0
    %560 = vmatpush.msra.mxu0 %v70
    %561 = vmatmul.f32.gmra.mxu0 %v543
    %v562 = vpop.f32.mrf.mxu0
    %v563 = vadd.f32 %v538, %v562
    %564 = vdwg.mxu0
    %v565 = vadd.f32 %v563, %v143
    %v566 = vtanh.pop %v565
    %567 = vmatpush.msra.mxu0 0.0
    %568 = vmatpush.msra.mxu0 0.0
    %569 = vmatpush.msra.mxu0 0.0
    %570 = vmatpush.msra.mxu0 0.0
    %571 = vmatpush.msra.mxu0 0.0
    %572 = vmatpush.msra.mxu0 0.0
    %573 = vmatpush.msra.mxu0 0.0
    %574 = vmatpush.msra.mxu0 0.0
    %575 = vmatpush.msra.mxu0 0.0
    %576 = vmatpush.msra.mxu0 0.0
    %577 = vmatpush.msra.mxu0 0.0
    %578 = vmatpush.msra.mxu0 0.0
    %579 = vmatpush.msra.mxu0 %v82
    %580 = vmatpush.msra.mxu0 %v81
    %581 = vmatpush.msra.mxu0 %v80
    %582 = vmatpush.msra.mxu0 %v79
    %583 = vmatmul.f32.gmra.mxu0 %v488
    %v584 = vpop.f32.mrf.mxu0
    %v585 = vadd.f32 0.0, %v584
    %586 = vdwg.mxu0
    %587 = vmatpush.msra.mxu0 0.0
    %588 = vmatpush.msra.mxu0 0.0
    %589 = vmatpush.msra.mxu0 0.0
    %590 = vmatpush.msra.mxu0 0.0
    %591 = vmatpush.msra.mxu0 0.0
    %592 = vmatpush.msra.mxu0 0.0
    %593 = vmatpush.msra.mxu0 0.0
    %594 = vmatpush.msra.mxu0 0.0
    %595 = vmatpush.msra.mxu0 0.0
    %596 = vmatpush.msra.mxu0 0.0
    %597 = vmatpush.msra.mxu0 0.0
    %598 = vmatpush.msra.mxu0 0.0
    %599 = vmatpush.msra.mxu0 %v74
    %600 = vmatpush.msra.mxu0 %v73
    %601 = vmatpush.msra.mxu0 %v72
    %602 = vmatpush.msra.mxu0 %v71
    %603 = vmatmul.f32.gmra.mxu0 %v518
    %v604 = vpop.f32.mrf.mxu0
    %v605 = vadd.f32 %v585, %v604
    %606 = vdwg.mxu0
    %v607 = vadd.f32 %v605, %v240
    %v608 = vtanh.pop %v607
    %v610 = vsel %vm94, %v608, 0
    %612 = vmatpush.msra.mxu0 0.0
    %613 = vmatpush.msra.mxu0 0.0
    %614 = vmatpush.msra.mxu0 0.0
    %615 = vmatpush.msra.mxu0 0.0
    %616 = vmatpush.msra.mxu0 0.0
    %617 = vmatpush.msra.mxu0 0.0
    %618 = vmatpush.msra.mxu0 0.0
    %619 = vmatpush.msra.mxu0 0.0
    %620 = vmatpush.msra.mxu0 0.0
    %621 = vmatpush.msra.mxu0 0.0
    %622 = vmatpush.msra.mxu0 0.0
    %623 = vmatpush.msra.mxu0 0.0
    %624 = vmatpush.msra.mxu0 %v88
    %625 = vmatpush.msra.mxu0 %v87
    %626 = vmatpush.msra.mxu0 %v86
    %627 = vmatpush.msra.mxu0 %v85
    %628 = vmatmul.f32.gmra.mxu0 %v610
    %v629 = vpop.f32.mrf.mxu0
    %v630 = vadd.f32 %v245, %v629
    %631 = vdwg.mxu0
    %633 = vrot.lane.b32.xlu0 %v630, 24
    %v634 = vpop.permute.xlu0 %633
    %vm636 = vcmask 255168
    %637 = vst.msk [vmem:[%s10] sm:$0x3] %vm636, %v634
    %v638 = vld [vmem:[%s0] sm:$0x3]
    %v640 = vsel %vm94, %v566, 0
    %642 = vmatpush.msra.mxu0 0.0
    %643 = vmatpush.msra.mxu0 0.0
    %644 = vmatpush.msra.mxu0 0.0
    %645 = vmatpush.msra.mxu0 0.0
    %646 = vmatpush.msra.mxu0 0.0
    %647 = vmatpush.msra.mxu0 0.0
    %648 = vmatpush.msra.mxu0 0.0
    %649 = vmatpush.msra.mxu0 0.0
    %650 = vmatpush.msra.mxu0 0.0
    %651 = vmatpush.msra.mxu0 0.0
    %652 = vmatpush.msra.mxu0 0.0
    %653 = vmatpush.msra.mxu0 0.0
    %654 = vmatpush.msra.mxu0 %v78
    %655 = vmatpush.msra.mxu0 %v77
    %656 = vmatpush.msra.mxu0 %v76
    %657 = vmatpush.msra.mxu0 %v75
    %658 = vmatmul.f32.gmra.mxu0 %v640
    %v659 = vpop.f32.mrf.mxu0
    %v660 = vadd.f32 0.0, %v659
    %661 = vdwg.mxu0
    %663 = vrot.lane.b32.xlu0 %v638, 88
    %v664 = vpop.permute.xlu0 %663
    %v665 = vsel %vm118, %v664, 0
    %667 = vmatpush.msra.mxu0 0.0
    %668 = vmatpush.msra.mxu0 0.0
    %669 = vmatpush.msra.mxu0 0.0
    %670 = vmatpush.msra.mxu0 0.0
    %671 = vmatpush.msra.mxu0 0.0
    %672 = vmatpush.msra.mxu0 0.0
    %673 = vmatpush.msra.mxu0 0.0
    %674 = vmatpush.msra.mxu0 0.0
    %675 = vmatpush.msra.mxu0 0.0
    %676 = vmatpush.msra.mxu0 0.0
    %677 = vmatpush.msra.mxu0 0.0
    %678 = vmatpush.msra.mxu0 0.0
    %679 = vmatpush.msra.mxu0 0.0
    %680 = vmatpush.msra.mxu0 0.0
    %681 = vmatpush.msra.mxu0 0.0
    %682 = vmatpush.msra.mxu0 %v70
    %683 = vmatmul.f32.gmra.mxu0 %v665
    %v684 = vpop.f32.mrf.mxu0
    %v685 = vadd.f32 %v660, %v684
    %686 = vdwg.mxu0
    %v687 = vadd.f32 %v685, %v143
    %v688 = vtanh.pop %v687
    %689 = vmatpush.msra.mxu0 0.0
    %690 = vmatpush.msra.mxu0 0.0
    %691 = vmatpush.msra.mxu0 0.0
    %692 = vmatpush.msra.mxu0 0.0
    %693 = vmatpush.msra.mxu0 0.0
    %694 = vmatpush.msra.mxu0 0.0
    %695 = vmatpush.msra.mxu0 0.0
    %696 = vmatpush.msra.mxu0 0.0
    %697 = vmatpush.msra.mxu0 0.0
    %698 = vmatpush.msra.mxu0 0.0
    %699 = vmatpush.msra.mxu0 0.0
    %700 = vmatpush.msra.mxu0 0.0
    %701 = vmatpush.msra.mxu0 %v82
    %702 = vmatpush.msra.mxu0 %v81
    %703 = vmatpush.msra.mxu0 %v80
    %704 = vmatpush.msra.mxu0 %v79
    %705 = vmatmul.f32.gmra.mxu0 %v610
    %v706 = vpop.f32.mrf.mxu0
    %v707 = vadd.f32 0.0, %v706
    %708 = vdwg.mxu0
    %709 = vmatpush.msra.mxu0 0.0
    %710 = vmatpush.msra.mxu0 0.0
    %711 = vmatpush.msra.mxu0 0.0
    %712 = vmatpush.msra.mxu0 0.0
    %713 = vmatpush.msra.mxu0 0.0
    %714 = vmatpush.msra.mxu0 0.0
    %715 = vmatpush.msra.mxu0 0.0
    %716 = vmatpush.msra.mxu0 0.0
    %717 = vmatpush.msra.mxu0 0.0
    %718 = vmatpush.msra.mxu0 0.0
    %719 = vmatpush.msra.mxu0 0.0
    %720 = vmatpush.msra.mxu0 0.0
    %721 = vmatpush.msra.mxu0 %v74
    %722 = vmatpush.msra.mxu0 %v73
    %723 = vmatpush.msra.mxu0 %v72
    %724 = vmatpush.msra.mxu0 %v71
    %725 = vmatmul.f32.gmra.mxu0 %v640
    %v726 = vpop.f32.mrf.mxu0
    %v727 = vadd.f32 %v707, %v726
    %728 = vdwg.mxu0
    %v729 = vadd.f32 %v727, %v240
    %v730 = vtanh.pop %v729
    %v732 = vsel %vm94, %v730, 0
    %734 = vmatpush.msra.mxu0 0.0
    %735 = vmatpush.msra.mxu0 0.0
    %736 = vmatpush.msra.mxu0 0.0
    %737 = vmatpush.msra.mxu0 0.0
    %738 = vmatpush.msra.mxu0 0.0
    %739 = vmatpush.msra.mxu0 0.0
    %740 = vmatpush.msra.mxu0 0.0
    %741 = vmatpush.msra.mxu0 0.0
    %742 = vmatpush.msra.mxu0 0.0
    %743 = vmatpush.msra.mxu0 0.0
    %744 = vmatpush.msra.mxu0 0.0
    %745 = vmatpush.msra.mxu0 0.0
    %746 = vmatpush.msra.mxu0 %v88
    %747 = vmatpush.msra.mxu0 %v87
    %748 = vmatpush.msra.mxu0 %v86
    %749 = vmatpush.msra.mxu0 %v85
    %750 = vmatmul.f32.gmra.mxu0 %v732
    %v751 = vpop.f32.mrf.mxu0
    %v752 = vadd.f32 %v245, %v751
    %753 = vdwg.mxu0
    %755 = vrot.lane.b32.xlu0 %v752, 32
    %v756 = vpop.permute.xlu0 %755
    %vm758 = vcmask 320768
    %759 = vst.msk [vmem:[%s10] sm:$0x3] %vm758, %v756
    %v760 = vld [vmem:[%s0] sm:$0x3]
    %v762 = vsel %vm94, %v688, 0
    %764 = vmatpush.msra.mxu0 0.0
    %765 = vmatpush.msra.mxu0 0.0
    %766 = vmatpush.msra.mxu0 0.0
    %767 = vmatpush.msra.mxu0 0.0
    %768 = vmatpush.msra.mxu0 0.0
    %769 = vmatpush.msra.mxu0 0.0
    %770 = vmatpush.msra.mxu0 0.0
    %771 = vmatpush.msra.mxu0 0.0
    %772 = vmatpush.msra.mxu0 0.0
    %773 = vmatpush.msra.mxu0 0.0
    %774 = vmatpush.msra.mxu0 0.0
    %775 = vmatpush.msra.mxu0 0.0
    %776 = vmatpush.msra.mxu0 %v78
    %777 = vmatpush.msra.mxu0 %v77
    %778 = vmatpush.msra.mxu0 %v76
    %779 = vmatpush.msra.mxu0 %v75
    %780 = vmatmul.f32.gmra.mxu0 %v762
    %v781 = vpop.f32.mrf.mxu0
    %v782 = vadd.f32 0.0, %v781
    %783 = vdwg.mxu0
    %785 = vrot.lane.b32.xlu0 %v760, 80
    %v786 = vpop.permute.xlu0 %785
    %v787 = vsel %vm118, %v786, 0
    %789 = vmatpush.msra.mxu0 0.0
    %790 = vmatpush.msra.mxu0 0.0
    %791 = vmatpush.msra.mxu0 0.0
    %792 = vmatpush.msra.mxu0 0.0
    %793 = vmatpush.msra.mxu0 0.0
    %794 = vmatpush.msra.mxu0 0.0
    %795 = vmatpush.msra.mxu0 0.0
    %796 = vmatpush.msra.mxu0 0.0
    %797 = vmatpush.msra.mxu0 0.0
    %798 = vmatpush.msra.mxu0 0.0
    %799 = vmatpush.msra.mxu0 0.0
    %800 = vmatpush.msra.mxu0 0.0
    %801 = vmatpush.msra.mxu0 0.0
    %802 = vmatpush.msra.mxu0 0.0
    %803 = vmatpush.msra.mxu0 0.0
    %804 = vmatpush.msra.mxu0 %v70
    %805 = vmatmul.f32.gmra.mxu0 %v787
    %v806 = vpop.f32.mrf.mxu0
    %v807 = vadd.f32 %v782, %v806
    %808 = vdwg.mxu0
    %v809 = vadd.f32 %v807, %v143
    %v810 = vtanh.pop %v809
    %811 = vmatpush.msra.mxu0 0.0
    %812 = vmatpush.msra.mxu0 0.0
    %813 = vmatpush.msra.mxu0 0.0
    %814 = vmatpush.msra.mxu0 0.0
    %815 = vmatpush.msra.mxu0 0.0
    %816 = vmatpush.msra.mxu0 0.0
    %817 = vmatpush.msra.mxu0 0.0
    %818 = vmatpush.msra.mxu0 0.0
    %819 = vmatpush.msra.mxu0 0.0
    %820 = vmatpush.msra.mxu0 0.0
    %821 = vmatpush.msra.mxu0 0.0
    %822 = vmatpush.msra.mxu0 0.0
    %823 = vmatpush.msra.mxu0 %v82
    %824 = vmatpush.msra.mxu0 %v81
    %825 = vmatpush.msra.mxu0 %v80
    %826 = vmatpush.msra.mxu0 %v79
    %827 = vmatmul.f32.gmra.mxu0 %v732
    %v828 = vpop.f32.mrf.mxu0
    %v829 = vadd.f32 0.0, %v828
    %830 = vdwg.mxu0
    %831 = vmatpush.msra.mxu0 0.0
    %832 = vmatpush.msra.mxu0 0.0
    %833 = vmatpush.msra.mxu0 0.0
    %834 = vmatpush.msra.mxu0 0.0
    %835 = vmatpush.msra.mxu0 0.0
    %836 = vmatpush.msra.mxu0 0.0
    %837 = vmatpush.msra.mxu0 0.0
    %838 = vmatpush.msra.mxu0 0.0
    %839 = vmatpush.msra.mxu0 0.0
    %840 = vmatpush.msra.mxu0 0.0
    %841 = vmatpush.msra.mxu0 0.0
    %842 = vmatpush.msra.mxu0 0.0
    %843 = vmatpush.msra.mxu0 %v74
    %844 = vmatpush.msra.mxu0 %v73
    %845 = vmatpush.msra.mxu0 %v72
    %846 = vmatpush.msra.mxu0 %v71
    %847 = vmatmul.f32.gmra.mxu0 %v762
    %v848 = vpop.f32.mrf.mxu0
    %v849 = vadd.f32 %v829, %v848
    %850 = vdwg.mxu0
    %v851 = vadd.f32 %v849, %v240
    %v852 = vtanh.pop %v851
    %v854 = vsel %vm94, %v852, 0
    %856 = vmatpush.msra.mxu0 0.0
    %857 = vmatpush.msra.mxu0 0.0
    %858 = vmatpush.msra.mxu0 0.0
    %859 = vmatpush.msra.mxu0 0.0
    %860 = vmatpush.msra.mxu0 0.0
    %861 = vmatpush.msra.mxu0 0.0
    %862 = vmatpush.msra.mxu0 0.0
    %863 = vmatpush.msra.mxu0 0.0
    %864 = vmatpush.msra.mxu0 0.0
    %865 = vmatpush.msra.mxu0 0.0
    %866 = vmatpush.msra.mxu0 0.0
    %867 = vmatpush.msra.mxu0 0.0
    %868 = vmatpush.msra.mxu0 %v88
    %869 = vmatpush.msra.mxu0 %v87
    %870 = vmatpush.msra.mxu0 %v86
    %871 = vmatpush.msra.mxu0 %v85
    %872 = vmatmul.f32.gmra.mxu0 %v854
    %v873 = vpop.f32.mrf.mxu0
    %v874 = vadd.f32 %v245, %v873
    %875 = vdwg.mxu0
    %877 = vrot.lane.b32.xlu0 %v874, 40
    %v878 = vpop.permute.xlu0 %877
    %vm880 = vcmask 386368
    %881 = vst.msk [vmem:[%s10] sm:$0x3] %vm880, %v878
    %v882 = vld [vmem:[%s0] sm:$0x3]
    %v884 = vsel %vm94, %v810, 0
    %886 = vmatpush.msra.mxu0 0.0
    %887 = vmatpush.msra.mxu0 0.0
    %888 = vmatpush.msra.mxu0 0.0
    %889 = vmatpush.msra.mxu0 0.0
    %890 = vmatpush.msra.mxu0 0.0
    %891 = vmatpush.msra.mxu0 0.0
    %892 = vmatpush.msra.mxu0 0.0
    %893 = vmatpush.msra.mxu0 0.0
    %894 = vmatpush.msra.mxu0 0.0
    %895 = vmatpush.msra.mxu0 0.0
    %896 = vmatpush.msra.mxu0 0.0
    %897 = vmatpush.msra.mxu0 0.0
    %898 = vmatpush.msra.mxu0 %v78
    %899 = vmatpush.msra.mxu0 %v77
    %900 = vmatpush.msra.mxu0 %v76
    %901 = vmatpush.msra.mxu0 %v75
    %902 = vmatmul.f32.gmra.mxu0 %v884
    %v903 = vpop.f32.mrf.mxu0
    %v904 = vadd.f32 0.0, %v903
    %905 = vdwg.mxu0
    %907 = vrot.lane.b32.xlu0 %v882, 72
    %v908 = vpop.permute.xlu0 %907
    %v909 = vsel %vm118, %v908, 0
    %911 = vmatpush.msra.mxu0 0.0
    %912 = vmatpush.msra.mxu0 0.0
    %913 = vmatpush.msra.mxu0 0.0
    %914 = vmatpush.msra.mxu0 0.0
    %915 = vmatpush.msra.mxu0 0.0
    %916 = vmatpush.msra.mxu0 0.0
    %917 = vmatpush.msra.mxu0 0.0
    %918 = vmatpush.msra.mxu0 0.0
    %919 = vmatpush.msra.mxu0 0.0
    %920 = vmatpush.msra.mxu0 0.0
    %921 = vmatpush.msra.mxu0 0.0
    %922 = vmatpush.msra.mxu0 0.0
    %923 = vmatpush.msra.mxu0 0.0
    %924 = vmatpush.msra.mxu0 0.0
    %925 = vmatpush.msra.mxu0 0.0
    %926 = vmatpush.msra.mxu0 %v70
    %927 = vmatmul.f32.gmra.mxu0 %v909
    %v928 = vpop.f32.mrf.mxu0
    %v929 = vadd.f32 %v904, %v928
    %930 = vdwg.mxu0
    %v931 = vadd.f32 %v929, %v143
    %v932 = vtanh.pop %v931
    %933 = vmatpush.msra.mxu0 0.0
    %934 = vmatpush.msra.mxu0 0.0
    %935 = vmatpush.msra.mxu0 0.0
    %936 = vmatpush.msra.mxu0 0.0
    %937 = vmatpush.msra.mxu0 0.0
    %938 = vmatpush.msra.mxu0 0.0
    %939 = vmatpush.msra.mxu0 0.0
    %940 = vmatpush.msra.mxu0 0.0
    %941 = vmatpush.msra.mxu0 0.0
    %942 = vmatpush.msra.mxu0 0.0
    %943 = vmatpush.msra.mxu0 0.0
    %944 = vmatpush.msra.mxu0 0.0
    %945 = vmatpush.msra.mxu0 %v82
    %946 = vmatpush.msra.mxu0 %v81
    %947 = vmatpush.msra.mxu0 %v80
    %948 = vmatpush.msra.mxu0 %v79
    %949 = vmatmul.f32.gmra.mxu0 %v854
    %v950 = vpop.f32.mrf.mxu0
    %v951 = vadd.f32 0.0, %v950
    %952 = vdwg.mxu0
    %953 = vmatpush.msra.mxu0 0.0
    %954 = vmatpush.msra.mxu0 0.0
    %955 = vmatpush.msra.mxu0 0.0
    %956 = vmatpush.msra.mxu0 0.0
    %957 = vmatpush.msra.mxu0 0.0
    %958 = vmatpush.msra.mxu0 0.0
    %959 = vmatpush.msra.mxu0 0.0
    %960 = vmatpush.msra.mxu0 0.0
    %961 = vmatpush.msra.mxu0 0.0
    %962 = vmatpush.msra.mxu0 0.0
    %963 = vmatpush.msra.mxu0 0.0
    %964 = vmatpush.msra.mxu0 0.0
    %965 = vmatpush.msra.mxu0 %v74
    %966 = vmatpush.msra.mxu0 %v73
    %967 = vmatpush.msra.mxu0 %v72
    %968 = vmatpush.msra.mxu0 %v71
    %969 = vmatmul.f32.gmra.mxu0 %v884
    %v970 = vpop.f32.mrf.mxu0
    %v971 = vadd.f32 %v951, %v970
    %972 = vdwg.mxu0
    %v973 = vadd.f32 %v971, %v240
    %v974 = vtanh.pop %v973
    %v976 = vsel %vm94, %v974, 0
    %978 = vmatpush.msra.mxu0 0.0
    %979 = vmatpush.msra.mxu0 0.0
    %980 = vmatpush.msra.mxu0 0.0
    %981 = vmatpush.msra.mxu0 0.0
    %982 = vmatpush.msra.mxu0 0.0
    %983 = vmatpush.msra.mxu0 0.0
    %984 = vmatpush.msra.mxu0 0.0
    %985 = vmatpush.msra.mxu0 0.0
    %986 = vmatpush.msra.mxu0 0.0
    %987 = vmatpush.msra.mxu0 0.0
    %988 = vmatpush.msra.mxu0 0.0
    %989 = vmatpush.msra.mxu0 0.0
    %990 = vmatpush.msra.mxu0 %v88
    %991 = vmatpush.msra.mxu0 %v87
    %992 = vmatpush.msra.mxu0 %v86
    %993 = vmatpush.msra.mxu0 %v85
    %994 = vmatmul.f32.gmra.mxu0 %v976
    %v995 = vpop.f32.mrf.mxu0
    %v996 = vadd.f32 %v245, %v995
    %997 = vdwg.mxu0
    %999 = vrot.lane.b32.xlu0 %v996, 48
    %v1000 = vpop.permute.xlu0 %999
    %vm1002 = vcmask 451968
    %1003 = vst.msk [vmem:[%s10] sm:$0x3] %vm1002, %v1000
    %1004 = vmatpush.msra.mxu0 0.0
    %1005 = vmatpush.msra.mxu0 0.0
    %1006 = vmatpush.msra.mxu0 0.0
    %1007 = vmatpush.msra.mxu0 0.0
    %1008 = vmatpush.msra.mxu0 0.0
    %1009 = vmatpush.msra.mxu0 0.0
    %1010 = vmatpush.msra.mxu0 0.0
    %1011 = vmatpush.msra.mxu0 0.0
    %1012 = vmatpush.msra.mxu0 0.0
    %1013 = vmatpush.msra.mxu0 0.0
    %1014 = vmatpush.msra.mxu0 0.0
    %1015 = vmatpush.msra.mxu0 0.0
    %1016 = vmatpush.msra.mxu0 %v82
    %1017 = vmatpush.msra.mxu0 %v81
    %1018 = vmatpush.msra.mxu0 %v80
    %1019 = vmatpush.msra.mxu0 %v79
    %1020 = vmatmul.f32.gmra.mxu0 %v976
    %v1021 = vpop.f32.mrf.mxu0
    %v1022 = vadd.f32 0.0, %v1021
    %1023 = vdwg.mxu0
    %v1025 = vsel %vm94, %v932, 0
    %1027 = vmatpush.msra.mxu0 0.0
    %1028 = vmatpush.msra.mxu0 0.0
    %1029 = vmatpush.msra.mxu0 0.0
    %1030 = vmatpush.msra.mxu0 0.0
    %1031 = vmatpush.msra.mxu0 0.0
    %1032 = vmatpush.msra.mxu0 0.0
    %1033 = vmatpush.msra.mxu0 0.0
    %1034 = vmatpush.msra.mxu0 0.0
    %1035 = vmatpush.msra.mxu0 0.0
    %1036 = vmatpush.msra.mxu0 0.0
    %1037 = vmatpush.msra.mxu0 0.0
    %1038 = vmatpush.msra.mxu0 0.0
    %1039 = vmatpush.msra.mxu0 %v74
    %1040 = vmatpush.msra.mxu0 %v73
    %1041 = vmatpush.msra.mxu0 %v72
    %1042 = vmatpush.msra.mxu0 %v71
    %1043 = vmatmul.f32.gmra.mxu0 %v1025
    %v1044 = vpop.f32.mrf.mxu0
    %v1045 = vadd.f32 %v1022, %v1044
    %1046 = vdwg.mxu0
    %v1047 = vadd.f32 %v1045, %v240
    %v1048 = vtanh.pop %v1047
    %v1050 = vsel %vm94, %v1048, 0
    %1052 = vmatpush.msra.mxu0 0.0
    %1053 = vmatpush.msra.mxu0 0.0
    %1054 = vmatpush.msra.mxu0 0.0
    %1055 = vmatpush.msra.mxu0 0.0
    %1056 = vmatpush.msra.mxu0 0.0
    %1057 = vmatpush.msra.mxu0 0.0
    %1058 = vmatpush.msra.mxu0 0.0
    %1059 = vmatpush.msra.mxu0 0.0
    %1060 = vmatpush.msra.mxu0 0.0
    %1061 = vmatpush.msra.mxu0 0.0
    %1062 = vmatpush.msra.mxu0 0.0
    %1063 = vmatpush.msra.mxu0 0.0
    %1064 = vmatpush.msra.mxu0 %v88
    %1065 = vmatpush.msra.mxu0 %v87
    %1066 = vmatpush.msra.mxu0 %v86
    %1067 = vmatpush.msra.mxu0 %v85
    %1068 = vmatmul.f32.gmra.mxu0 %v1050
    %v1069 = vpop.f32.mrf.mxu0
    %v1070 = vadd.f32 %v245, %v1069
    %1071 = vdwg.mxu0
    %1073 = vrot.lane.b32.xlu0 %v1070, 56
    %v1074 = vpop.permute.xlu0 %1073
    %vm1076 = vcmask 517568
    %1077 = vst.msk [vmem:[%s10] sm:$0x3] %vm1076, %v1074
    %vm1078 = vcmask 254976
    %1079 = vst.msk [vmem:[#allocation7] sm:$0x3] %vm1078, %v932
    %1080 = vst.msk [vmem:[#allocation7 + $0x2] sm:$0x3] %vm1078, %v1048
    // Predicated region
    $region50: #{my_rnn_forward.1} parent=1 // pred_check
      _
    $region51: #{my_rnn_forward.1} parent=1 // pred_check_branch
      %1082 = sbr.rel (0) target = $region53
    $region52: #{my_rnn_forward.1} parent=1 // pred_region
      _
    $region53: #{my_rnn_forward.1} parent=1 // pred_fallthru
      _
    // Predicated region
    $region54: #{my_rnn_forward.1} parent=1 // pred_check
      _
    $region55: #{my_rnn_forward.1} parent=1 // pred_check_branch
      %1084 = sbr.rel (0) target = $region57
    $region56: #{my_rnn_forward.1} parent=1 // pred_region
      %1086 = vsyncadd [#allocation4], 0
      %s1087 = sshll.u32 [#allocation7], 4
      %s1088 = int_to_ptr.vmem [resolvable:$true] %s1087
      %s1089 = sshll.u32 %s11, 4
      %s1090 = int_to_ptr.hbm [resolvable:$true] %s1089
      %1095 = dma.vmem_to_hbm [thread:$0]  %s1088, 64, %s1090, [#allocation4], 32, 32, 2
    $region57: #{my_rnn_forward.1} parent=1 // pred_fallthru
      _
    // Predicated region
    $region58: #{my_rnn_forward.1} parent=1 // pred_check
      _
    $region59: #{my_rnn_forward.1} parent=1 // pred_check_branch
      %1097 = sbr.rel (0) target = $region61
    $region60: #{my_rnn_forward.1} parent=1 // pred_region
      _
    $region61: #{my_rnn_forward.1} parent=1 // pred_fallthru
      _
    // Predicated region
    $region62: #{my_rnn_forward.1} parent=1 // pred_check
      _
    $region63: #{my_rnn_forward.1} parent=1 // pred_check_branch
      %1099 = sbr.rel (0) target = $region65
    $region64: #{my_rnn_forward.1} parent=1 // pred_region
      %1101 = dma.done [#allocation4], 64
    $region65: #{my_rnn_forward.1} parent=1 // pred_fallthru
      _
    %1102 = vsyncpa [#allocation3], 1
    %1103 = vsyncpa [#allocation6], 1
    %1104 = vsyncpa [#allocation4], 1

</llo_original>
